<compile_context>
chip_gen: v5e
topology: v5e:2x2
jax: 0.10.0
libtpu: 0.0.40
codegen_flags: <defaults>
</compile_context>

<pallas_src>
import math

import jax
import jax.numpy as jnp
from jax.experimental import pallas as pl
from jax.experimental.pallas import tpu as pltpu


def _copy_kernel(x_ref, o_ref):
    # Pure lane-dense copy: (TB, F) VMEM tile in -> (TB, F) VMEM tile out.
    o_ref[...] = x_ref[...]


def get_fv(x: jax.Array) -> jax.Array:
    """Pallas implementation of GetFv.forward.

    Accepts x of shape (B, F) or (B, F, 1, ..., 1) and returns (B, F).
    """
    bs = x.shape[0]
    fv_s = x.shape[1]
    # Static-shape check (no device round-trip).
    assert math.prod(x.shape[2:]) == 1, (
        "GetFv requires trailing dims to be singleton"
    )

    # Metadata-only squeeze of the trailing singleton dims (free in XLA).
    # The kernel then operates on a lane-dense 2-D array.
    x2 = x.reshape(bs, fv_s)
    # NOTE: x2 alone already has the required semantics; the pallas_call below
    # keeps the copy as an explicit kernel per the task requirement.

    # Batch tile: largest multiple of 8 rows such that the double-buffered
    # in + out tiles (~4 buffers) stay well under the scoped-VMEM limit on all
    # generations (16 MiB default on v5e, 32 MiB on v6e/v7x, 64 MiB physical
    # on v7x).  ~3 MiB per tile -> ~12 MiB worst case.
    itemsize = jnp.dtype(x.dtype).itemsize
    per_buffer_budget = 3 * 1024 * 1024  # bytes
    rows_budget = max(8, (per_buffer_budget // max(1, fv_s * itemsize)) // 8 * 8)
    if bs <= rows_budget or bs < 8:
        # Full-array block along batch (always satisfies the (8,128) rule
        # because block dims equal the full array dims).
        tb = bs
    else:
        tb = int(rows_budget)  # multiple of 8; last partial block is masked

    grid = (pl.cdiv(bs, tb),)

    out = pl.pallas_call(
        _copy_kernel,
        out_shape=jax.ShapeDtypeStruct((bs, fv_s), x.dtype),
        grid=grid,
        in_specs=[pl.BlockSpec((tb, fv_s), lambda i: (i, 0))],
        out_specs=pl.BlockSpec((tb, fv_s), lambda i: (i, 0)),
        compiler_params=pltpu.CompilerParams(
            # Batch tiles are independent -> shard across TensorCores
            # (doubles effective copy bandwidth on v7x megacore).
            dimension_semantics=("parallel",),
        ),
    )(x2)
    return out


if __name__ == "__main__":
    key = jax.random.PRNGKey(0)
    B, F = 2, 32
    # Typical GetFv input: globally-pooled features of shape (B, F, 1, 1).
    x = jax.random.normal(key, (B, F, 1, 1), dtype=jnp.float32)

    y = get_fv(x)
    jax.block_until_ready(y)

    # Reference check against plain-JAX reshape (== torch .view(bs, fv_s)).
    y_ref = x.reshape(B, F)
    assert y.shape == (B, F)
    assert jnp.array_equal(y, y_ref)

    print("KERNEL_OK")
</pallas_src>

<mosaic_0001>
module attributes {stable_mosaic.version = 11 : i64} {
  func.func @_copy_kernel(%arg0: i32, %arg1: memref<2x32xf32, #tpu.memory_space<vmem>>, %arg2: memref<2x32xf32, #tpu.memory_space<vmem>>) attributes {dimension_semantics = [#tpu.dimension_semantics<parallel>], iteration_bounds = array<i64: 1>, scalar_prefetch = 0 : i64, scratch_operands = 0 : i64, tpu.core_type = #tpu.core_type<tc>, window_params = [{transform_indices = @transform_0, window_bounds = array<i64: 2, 32>}, {transform_indices = @transform_1, window_bounds = array<i64: 2, 32>}]} {
    %c0 = arith.constant 0 : index
    %c0_0 = arith.constant 0 : index
    %0 = vector.load %arg1[%c0, %c0_0] : memref<2x32xf32, #tpu.memory_space<vmem>>, vector<2x32xf32>
    %c0_1 = arith.constant 0 : index
    %c0_2 = arith.constant 0 : index
    %1 = vector.load %arg2[%c0_1, %c0_2] : memref<2x32xf32, #tpu.memory_space<vmem>>, vector<2x32xf32>
    tpu.vector_store %arg2[%c0_1, %c0_2], %0 {strides = array<i32>} : memref<2x32xf32, #tpu.memory_space<vmem>>, vector<2x32xf32>,
    return
  }
  func.func @transform_0(%arg0: i32) -> (i32, i32) {
    %c0_i32 = arith.constant 0 : i32
    %c0_i32_0 = arith.constant 0 : i32
    return %arg0, %c0_i32 : i32, i32
  }
  func.func @transform_1(%arg0: i32) -> (i32, i32) {
    %c0_i32 = arith.constant 0 : i32
    %c0_i32_0 = arith.constant 0 : i32
    return %arg0, %c0_i32 : i32, i32
  }
}

</mosaic_0001>

<llo_original>
// kernel: tpu_custom_call.1
$region0: #{tpu_custom_call.1}
  #allocation0 [shape = 'u32[]', space=smem, size = 0x4, offset = 0x4, fixed_abs, tag = 'smem constant byte address 0x4 - core index']
  #allocation1 [shape = 'u32[72,128]{1,0:T(1,128)}', space=vmem, size = 0x9000, scoped, tag = 'internal scratch']
  %s0 = inlined_call_operand.hbm [shape: f32[2,32], index: 0, kind: input, shape index: {}]
  %s1 = inlined_call_operand.hbm [shape: f32[2,32], index: 1, kind: output, shape index: {}]
  %s2 = sld [smem:[#allocation0]]
  $region18: #{tpu_custom_call.1} parent=0
    _
  %s4 = ssub.s32 1, %s2
  %s5 = scalar_select 0, %s4, %s2
  $region1: #{tpu_custom_call.1} parent=0
    #allocation2 [shape = 'u8[1024]{0}', space=vmem, size = 0x400, scoped, tag = 'input window, operand 0, single buffered']
    #allocation3 [shape = 's32[1]{0}', space=sflag, size = 0x4, scoped, tag = 'scoped memory for tpu_custom_call.1']
    #allocation4 [shape = 's32[1]{0}', space=sflag, size = 0x4, scoped, tag = 'scoped memory for tpu_custom_call.1']
    #allocation5 [shape = 'u8[1024]{0}', space=vmem, size = 0x400, scoped, tag = 'output window, operand 0, single buffered']
    %6 = vsyncpa [#allocation3], 0
    %7 = vsyncpa [#allocation4], 0
    // Predicated region
    $region2: #{tpu_custom_call.1} parent=1 // pred_check
      _
    $region3: #{tpu_custom_call.1} parent=1 // pred_check_branch
      %9 = sbr.rel (0) target = $region5
    $region4: #{tpu_custom_call.1} parent=1 // pred_region
      %11 = vsyncadd [#allocation3], 0
      %s13 = sshll.u32 %s0, 4
      %s14 = int_to_ptr.hbm [resolvable:$true] %s13
      %s15 = sshll.u32 [#allocation2], 4
      %s16 = int_to_ptr.vmem [resolvable:$true] %s15
      %18 = dma.hbm_to_vmem [thread:$0]  %s14, 32, %s16, [#allocation3]
    $region5: #{tpu_custom_call.1} parent=1 // pred_fallthru
      _
    // Predicated region
    $region6: #{tpu_custom_call.1} parent=1 // pred_check
      _
    $region7: #{tpu_custom_call.1} parent=1 // pred_check_branch
      %20 = sbr.rel (0) target = $region9
    $region8: #{tpu_custom_call.1} parent=1 // pred_region
      %22 = dma.done [#allocation3], 32
    $region9: #{tpu_custom_call.1} parent=1 // pred_fallthru
      _
    %v23 = vld [vmem:[#allocation2] sm:$0x3]
    %vm24 = vcmask 254976
    %25 = vst.msk [vmem:[#allocation5] sm:$0x3] %vm24, %v23
    // Predicated region
    $region10: #{tpu_custom_call.1} parent=1 // pred_check
      _
    $region11: #{tpu_custom_call.1} parent=1 // pred_check_branch
      %27 = sbr.rel (0) target = $region13
    $region12: #{tpu_custom_call.1} parent=1 // pred_region
      %29 = vsyncadd [#allocation4], 0
      %s31 = sshll.u32 [#allocation5], 4
      %s32 = int_to_ptr.vmem [resolvable:$true] %s31
      %s33 = sshll.u32 %s1, 4
      %s34 = int_to_ptr.hbm [resolvable:$true] %s33
      %36 = dma.vmem_to_hbm [thread:$0]  %s32, 32, %s34, [#allocation4]
    $region13: #{tpu_custom_call.1} parent=1 // pred_fallthru
      _
    // Predicated region
    $region14: #{tpu_custom_call.1} parent=1 // pred_check
      _
    $region15: #{tpu_custom_call.1} parent=1 // pred_check_branch
      %38 = sbr.rel (0) target = $region17
    $region16: #{tpu_custom_call.1} parent=1 // pred_region
      %40 = dma.done [#allocation4], 32
    $region17: #{tpu_custom_call.1} parent=1 // pred_fallthru
      _
    %41 = vsyncpa [#allocation3], 1
    %42 = vsyncpa [#allocation4], 1

</llo_original>
